<compile_context>
chip_gen: v7x
topology: tpu7x:2x2x1
jax: 0.10.0
libtpu: 0.0.40
codegen_flags: <defaults>
</compile_context>

<pallas_src>
import functools

import jax
import jax.numpy as jnp
from jax.experimental import pallas as pl
from jax.experimental.pallas import tpu as pltpu

LANE = 128
SUBLANE = 8


def _round_up(n, m):
    return ((n + m - 1) // m) * m


def gru_cell_kernel(x_ref, h_ref, w_all_ref, u_za_ref, u_h_ref,
                    b_all_ref, va_ref, out_ref, *, hp):
    """One batch tile.  hp = lane-padded hidden size (multiple of 128)."""
    x = x_ref[...]
    h = h_ref[...]
    h_f32 = h.astype(jnp.float32)

    # Fused input projection + fused biases: [xW_z + b_z | xW_a + pad | xW_h + b_h]
    xw = jnp.dot(x, w_all_ref[...],
                 preferred_element_type=jnp.float32) + b_all_ref[...]
    # Fused hidden projection: [hU_z | hU_a]
    hu = jnp.dot(h, u_za_ref[...], preferred_element_type=jnp.float32)

    xw_z = xw[:, 0 * hp:1 * hp]
    xw_a = xw[:, 1 * hp:2 * hp]
    xw_h = xw[:, 2 * hp:3 * hp]
    hu_z = hu[:, 0 * hp:1 * hp]
    hu_a = hu[:, 1 * hp:2 * hp]

    # Update gate (bias already folded in).
    z_t = jax.nn.sigmoid(xw_z + hu_z)

    # Attention replacing the reset gate.  Padded lanes: pre-tanh bias -30
    # => tanh = -1, and v_a = +1e30 there => logits ~ -1e30 => exp == 0.
    attn_in = jnp.tanh(xw_a + hu_a)
    logits = attn_in * va_ref[...]
    m = jnp.max(logits, axis=-1, keepdims=True)
    e = jnp.exp(logits - m)
    denom = jnp.sum(e, axis=-1, keepdims=True)
    attn_w = e * pl.reciprocal(denom, approx=True)
    attended_h = (attn_w * h_f32).astype(h.dtype)

    # Candidate state (b_h already folded into xw_h).
    h_tilde = jnp.tanh(
        xw_h + jnp.dot(attended_h, u_h_ref[...],
                       preferred_element_type=jnp.float32))

    # Blend.
    out_ref[...] = ((1.0 - z_t) * h_f32 + z_t * h_tilde).astype(out_ref.dtype)


def improved_gru_cell(x, h_prev, params, *, matmul_dtype=jnp.float32,
                      batch_tile=256):
    """x: (B, D_in), h_prev: (B, H).  params: dict of (in, out) weights."""
    B, d_in = x.shape
    H = h_prev.shape[1]

    hp = _round_up(H, LANE)                # lane-dense hidden dim
    bp = _round_up(B, SUBLANE)
    tb = min(batch_tile, bp)               # batch tile (multiple of 8)
    bp = _round_up(bp, tb)                 # grid divides evenly
    grid = (bp // tb,)

    f32 = jnp.float32

    def pad2(a, rows, cols):
        return jnp.pad(a, ((0, rows - a.shape[0]), (0, cols - a.shape[1])))

    W_z, U_z, b_z = params["W_z"], params["U_z"], params["b_z"]
    W_a, U_a, v_a = params["W_a"], params["U_a"], params["v_a"]
    W_h, U_h, b_h = params["W_h"], params["U_h"], params["b_h"]

    # Stacked / padded weights (done once in the wrapper).
    W_all = jnp.concatenate(
        [pad2(W_z, d_in, hp), pad2(W_a, d_in, hp), pad2(W_h, d_in, hp)],
        axis=1)                                            # (D_in, 3*Hp)
    U_za = jnp.concatenate(
        [pad2(U_z, hp, hp), pad2(U_a, hp, hp)], axis=1)    # (Hp, 2*Hp)
    U_h_p = pad2(U_h, hp, hp)                              # (Hp, Hp)

    lane_valid = jnp.arange(hp) < H
    attn_pad_bias = jnp.where(lane_valid, 0.0, -30.0).astype(f32)
    b_all = jnp.concatenate(
        [jnp.pad(b_z.reshape(-1).astype(f32), (0, hp - H)),
         attn_pad_bias,
         jnp.pad(b_h.reshape(-1).astype(f32), (0, hp - H))]
    ).reshape(1, 3 * hp)                                   # (1, 3*Hp)
    v_a_p = jnp.where(lane_valid,
                      jnp.pad(v_a.reshape(-1).astype(f32), (0, hp - H)),
                      1e30).reshape(1, hp)                 # (1, Hp)

    x_p = pad2(x, bp, d_in).astype(matmul_dtype)
    h_p = pad2(h_prev, bp, hp).astype(matmul_dtype)
    W_all = W_all.astype(matmul_dtype)
    U_za = U_za.astype(matmul_dtype)
    U_h_p = U_h_p.astype(matmul_dtype)

    kernel = functools.partial(gru_cell_kernel, hp=hp)

    out = pl.pallas_call(
        kernel,
        out_shape=jax.ShapeDtypeStruct((bp, hp), jnp.float32),
        grid=grid,
        in_specs=[
            pl.BlockSpec((tb, d_in), lambda i: (i, 0)),        # x  (per batch tile)
            pl.BlockSpec((tb, hp), lambda i: (i, 0)),          # h_prev
            pl.BlockSpec((d_in, 3 * hp), lambda i: (0, 0)),    # W_all (resident)
            pl.BlockSpec((hp, 2 * hp), lambda i: (0, 0)),      # U_za  (resident)
            pl.BlockSpec((hp, hp), lambda i: (0, 0)),          # U_h   (resident)
            pl.BlockSpec((1, 3 * hp), lambda i: (0, 0)),       # fused biases
            pl.BlockSpec((1, hp), lambda i: (0, 0)),           # v_a (+pad mask)
        ],
        out_specs=pl.BlockSpec((tb, hp), lambda i: (i, 0)),
        compiler_params=pltpu.CompilerParams(
            dimension_semantics=("parallel",)),
    )(x_p, h_p, W_all, U_za, U_h_p, b_all, v_a_p)

    return out[:B, :H]


def reference_gru_cell(x, h_prev, p):
    z_t = jax.nn.sigmoid(x @ p["W_z"] + h_prev @ p["U_z"] + p["b_z"])
    attn_in = jnp.tanh(x @ p["W_a"] + h_prev @ p["U_a"])
    attn_w = jax.nn.softmax(attn_in * p["v_a"], axis=-1)
    attended_h = attn_w * h_prev
    h_tilde = jnp.tanh(x @ p["W_h"] + attended_h @ p["U_h"] + p["b_h"])
    return (1.0 - z_t) * h_prev + z_t * h_tilde


def make_params(key, input_size, hidden_size):
    ks = jax.random.split(key, 6)
    scale_in = 1.0 / jnp.sqrt(jnp.float32(input_size))
    scale_h = 1.0 / jnp.sqrt(jnp.float32(hidden_size))
    # nn.Linear(in, out, bias=False) weight is (out, in) applied as x @ W.T;
    # store pre-transposed (in, out) so the kernel multiplies directly.
    return {
        "W_z": jax.random.uniform(ks[0], (input_size, hidden_size), jnp.float32,
                                  -scale_in, scale_in),
        "U_z": jax.random.uniform(ks[1], (hidden_size, hidden_size), jnp.float32,
                                  -scale_h, scale_h),
        "b_z": jnp.zeros((1, hidden_size), jnp.float32),
        "W_a": jax.random.uniform(ks[2], (input_size, hidden_size), jnp.float32,
                                  -scale_in, scale_in),
        "U_a": jax.random.uniform(ks[3], (hidden_size, hidden_size), jnp.float32,
                                  -scale_h, scale_h),
        "v_a": jax.random.normal(ks[4], (1, hidden_size), jnp.float32),
        "W_h": jax.random.uniform(ks[5], (input_size, hidden_size), jnp.float32,
                                  -scale_in, scale_in),
        "U_h": jax.random.uniform(jax.random.fold_in(key, 99),
                                  (hidden_size, hidden_size), jnp.float32,
                                  -scale_h, scale_h),
        "b_h": jnp.zeros((1, hidden_size), jnp.float32),
    }


if __name__ == "__main__":
    key = jax.random.PRNGKey(0)
    k_x, k_h, k_p = jax.random.split(key, 3)

    batch, input_size, hidden = 8, 16, 32
    x = jax.random.normal(k_x, (batch, input_size), jnp.float32)
    h_prev = jax.random.normal(k_h, (batch, hidden), jnp.float32)
    params = make_params(k_p, input_size, hidden)

    h_t = improved_gru_cell(x, h_prev, params)    # f32 matmuls by default
    h_t = jax.block_until_ready(h_t)

    h_ref = reference_gru_cell(x, h_prev, params)
    # Tolerance loosened slightly vs 1e-5: approx (EUP) reciprocal in softmax.
    assert jnp.allclose(h_t, h_ref, atol=2e-3, rtol=2e-3), (
        f"max abs err {jnp.max(jnp.abs(h_t - h_ref))}")

    print("KERNEL_OK")
</pallas_src>

<mosaic_0001>
module attributes {stable_mosaic.version = 11 : i64} {
  func.func @gru_cell_kernel(%arg0: i32, %arg1: memref<8x16xf32, #tpu.memory_space<vmem>>, %arg2: memref<8x128xf32, #tpu.memory_space<vmem>>, %arg3: memref<16x384xf32, #tpu.memory_space<vmem>>, %arg4: memref<128x256xf32, #tpu.memory_space<vmem>>, %arg5: memref<128x128xf32, #tpu.memory_space<vmem>>, %arg6: memref<1x384xf32, #tpu.memory_space<vmem>>, %arg7: memref<1x128xf32, #tpu.memory_space<vmem>>, %arg8: memref<8x128xf32, #tpu.memory_space<vmem>>) attributes {dimension_semantics = [#tpu.dimension_semantics<parallel>], iteration_bounds = array<i64: 1>, scalar_prefetch = 0 : i64, scratch_operands = 0 : i64, tpu.core_type = #tpu.core_type<tc>, window_params = [{transform_indices = @transform_0, window_bounds = array<i64: 8, 16>}, {transform_indices = @transform_1, window_bounds = array<i64: 8, 128>}, {pipeline_mode = #tpu.pipeline_mode<synchronous>, transform_indices = @transform_2, window_bounds = array<i64: 16, 384>}, {pipeline_mode = #tpu.pipeline_mode<synchronous>, transform_indices = @transform_3, window_bounds = array<i64: 128, 256>}, {pipeline_mode = #tpu.pipeline_mode<synchronous>, transform_indices = @transform_4, window_bounds = array<i64: 128, 128>}, {pipeline_mode = #tpu.pipeline_mode<synchronous>, transform_indices = @transform_5, window_bounds = array<i64: 1, 384>}, {pipeline_mode = #tpu.pipeline_mode<synchronous>, transform_indices = @transform_6, window_bounds = array<i64: 1, 128>}, {transform_indices = @transform_7, window_bounds = array<i64: 8, 128>}]} {
    %c0 = arith.constant 0 : index
    %c0_0 = arith.constant 0 : index
    %0 = vector.load %arg1[%c0, %c0_0] : memref<8x16xf32, #tpu.memory_space<vmem>>, vector<8x16xf32>
    %c0_1 = arith.constant 0 : index
    %c0_2 = arith.constant 0 : index
    %1 = vector.load %arg2[%c0_1, %c0_2] : memref<8x128xf32, #tpu.memory_space<vmem>>, vector<8x128xf32>
    %c0_3 = arith.constant 0 : index
    %c0_4 = arith.constant 0 : index
    %2 = vector.load %arg3[%c0_3, %c0_4] : memref<16x384xf32, #tpu.memory_space<vmem>>, vector<16x384xf32>
    %cst = arith.constant dense<0.000000e+00> : vector<8x384xf32>
    %3 = tpu.matmul %0, %2, %cst {dimension_numbers = #tpu.dot_dimension_numbers<[1], [0], [0], [1], [0, 0, 1, 1], [], []>} : vector<8x16xf32>, vector<16x384xf32>, vector<8x384xf32> -> vector<8x384xf32>
    %c0_5 = arith.constant 0 : index
    %c0_6 = arith.constant 0 : index
    %4 = vector.load %arg6[%c0_5, %c0_6] : memref<1x384xf32, #tpu.memory_space<vmem>>, vector<1x384xf32>
    %5 = vector.broadcast %4 : vector<1x384xf32> to vector<8x384xf32>
    %6 = arith.addf %3, %5 : vector<8x384xf32>
    %c0_7 = arith.constant 0 : index
    %c0_8 = arith.constant 0 : index
    %7 = vector.load %arg4[%c0_7, %c0_8] : memref<128x256xf32, #tpu.memory_space<vmem>>, vector<128x256xf32>
    %cst_9 = arith.constant dense<0.000000e+00> : vector<8x256xf32>
    %8 = tpu.matmul %1, %7, %cst_9 {dimension_numbers = #tpu.dot_dimension_numbers<[1], [0], [0], [1], [0, 0, 1, 1], [], []>} : vector<8x128xf32>, vector<128x256xf32>, vector<8x256xf32> -> vector<8x256xf32>
    %9 = vector.extract_strided_slice %6 {offsets = [0, 0], sizes = [8, 128], strides = [1, 1]} : vector<8x384xf32> to vector<8x128xf32>
    %10 = vector.extract_strided_slice %6 {offsets = [0, 128], sizes = [8, 128], strides = [1, 1]} : vector<8x384xf32> to vector<8x128xf32>
    %11 = vector.extract_strided_slice %6 {offsets = [0, 256], sizes = [8, 128], strides = [1, 1]} : vector<8x384xf32> to vector<8x128xf32>
    %12 = vector.extract_strided_slice %8 {offsets = [0, 0], sizes = [8, 128], strides = [1, 1]} : vector<8x256xf32> to vector<8x128xf32>
    %13 = vector.extract_strided_slice %8 {offsets = [0, 128], sizes = [8, 128], strides = [1, 1]} : vector<8x256xf32> to vector<8x128xf32>
    %14 = arith.addf %9, %12 : vector<8x128xf32>
    %15 = arith.negf %14 : vector<8x128xf32>
    %16 = math.exp %15 : vector<8x128xf32>
    %cst_10 = arith.constant 1.000000e+00 : f32
    %17 = vector.broadcast %cst_10 : f32 to vector<8x128xf32>
    %18 = arith.addf %17, %16 : vector<8x128xf32>
    %19 = arith.divf %17, %18 : vector<8x128xf32>
    %20 = arith.addf %10, %13 : vector<8x128xf32>
    %21 = math.tanh %20 : vector<8x128xf32>
    %c0_11 = arith.constant 0 : index
    %c0_12 = arith.constant 0 : index
    %22 = vector.load %arg7[%c0_11, %c0_12] : memref<1x128xf32, #tpu.memory_space<vmem>>, vector<1x128xf32>
    %23 = vector.broadcast %22 : vector<1x128xf32> to vector<8x128xf32>
    %24 = arith.mulf %21, %23 : vector<8x128xf32>
    %cst_13 = arith.constant dense<0xFF800000> : vector<8xf32>
    %25 = vector.multi_reduction <maximumf>, %24, %cst_13 [1] : vector<8x128xf32> to vector<8xf32>
    %26 = vector.shape_cast %25 : vector<8xf32> to vector<8x1xf32>
    %27 = vector.broadcast %26 : vector<8x1xf32> to vector<8x128xf32>
    %28 = arith.subf %24, %27 : vector<8x128xf32>
    %29 = math.exp %28 : vector<8x128xf32>
    %cst_14 = arith.constant dense<0.000000e+00> : vector<8xf32>
    %30 = vector.multi_reduction <add>, %29, %cst_14 [1] : vector<8x128xf32> to vector<8xf32>
    %31 = vector.shape_cast %30 : vector<8xf32> to vector<8x1xf32>
    %32 = tpu.reciprocal %31 {approx = true} : vector<8x1xf32> -> vector<8x1xf32>
    %33 = vector.broadcast %32 : vector<8x1xf32> to vector<8x128xf32>
    %34 = arith.mulf %29, %33 : vector<8x128xf32>
    %35 = arith.mulf %34, %1 : vector<8x128xf32>
    %c0_15 = arith.constant 0 : index
    %c0_16 = arith.constant 0 : index
    %36 = vector.load %arg5[%c0_15, %c0_16] : memref<128x128xf32, #tpu.memory_space<vmem>>, vector<128x128xf32>
    %cst_17 = arith.constant dense<0.000000e+00> : vector<8x128xf32>
    %37 = tpu.matmul %35, %36, %cst_17 {dimension_numbers = #tpu.dot_dimension_numbers<[1], [0], [0], [1], [0, 0, 1, 1], [], []>} : vector<8x128xf32>, vector<128x128xf32>, vector<8x128xf32> -> vector<8x128xf32>
    %38 = arith.addf %11, %37 : vector<8x128xf32>
    %39 = math.tanh %38 : vector<8x128xf32>
    %cst_18 = arith.constant 1.000000e+00 : f32
    %40 = vector.broadcast %cst_18 : f32 to vector<8x128xf32>
    %41 = arith.subf %40, %19 : vector<8x128xf32>
    %42 = arith.mulf %41, %1 : vector<8x128xf32>
    %43 = arith.mulf %19, %39 : vector<8x128xf32>
    %44 = arith.addf %42, %43 : vector<8x128xf32>
    %c0_19 = arith.constant 0 : index
    %c0_20 = arith.constant 0 : index
    %45 = vector.load %arg8[%c0_19, %c0_20] : memref<8x128xf32, #tpu.memory_space<vmem>>, vector<8x128xf32>
    tpu.vector_store %arg8[%c0_19, %c0_20], %44 {strides = array<i32>} : memref<8x128xf32, #tpu.memory_space<vmem>>, vector<8x128xf32>,
    return
  }
  func.func @transform_0(%arg0: i32) -> (i32, i32) {
    %c0_i32 = arith.constant 0 : i32
    %c0_i32_0 = arith.constant 0 : i32
    return %arg0, %c0_i32 : i32, i32
  }
  func.func @transform_1(%arg0: i32) -> (i32, i32) {
    %c0_i32 = arith.constant 0 : i32
    %c0_i32_0 = arith.constant 0 : i32
    return %arg0, %c0_i32 : i32, i32
  }
  func.func @transform_2(%arg0: i32) -> (i32, i32) {
    %c0_i32 = arith.constant 0 : i32
    %c0_i32_0 = arith.constant 0 : i32
    %c0_i32_1 = arith.constant 0 : i32
    return %c0_i32, %c0_i32_0 : i32, i32
  }
  func.func @transform_3(%arg0: i32) -> (i32, i32) {
    %c0_i32 = arith.constant 0 : i32
    %c0_i32_0 = arith.constant 0 : i32
    %c0_i32_1 = arith.constant 0 : i32
    return %c0_i32, %c0_i32_0 : i32, i32
  }
  func.func @transform_4(%arg0: i32) -> (i32, i32) {
    %c0_i32 = arith.constant 0 : i32
    %c0_i32_0 = arith.constant 0 : i32
    %c0_i32_1 = arith.constant 0 : i32
    return %c0_i32, %c0_i32_0 : i32, i32
  }
  func.func @transform_5(%arg0: i32) -> (i32, i32) {
    %c0_i32 = arith.constant 0 : i32
    %c0_i32_0 = arith.constant 0 : i32
    %c0_i32_1 = arith.constant 0 : i32
    return %c0_i32, %c0_i32_0 : i32, i32
  }
  func.func @transform_6(%arg0: i32) -> (i32, i32) {
    %c0_i32 = arith.constant 0 : i32
    %c0_i32_0 = arith.constant 0 : i32
    %c0_i32_1 = arith.constant 0 : i32
    return %c0_i32, %c0_i32_0 : i32, i32
  }
  func.func @transform_7(%arg0: i32) -> (i32, i32) {
    %c0_i32 = arith.constant 0 : i32
    %c0_i32_0 = arith.constant 0 : i32
    return %arg0, %c0_i32 : i32, i32
  }
}

</mosaic_0001>

<llo_original>
// kernel: tpu_custom_call.1
$region0: #{tpu_custom_call.1}
  #allocation0 [shape = 'u32[]', space=smem, size = 0x4, offset = 0x4, fixed_abs, tag = 'smem constant byte address 0x4 - core index']
  #allocation1 [shape = 'u32[144,128]{1,0:T(1,128)}', space=vmem, size = 0x12000, scoped, tag = 'internal scratch']
  %s0 = inlined_call_operand.hbm [shape: f32[8,16], index: 0, kind: input, shape index: {}]
  %s1 = inlined_call_operand.hbm [shape: f32[8,128], index: 1, kind: input, shape index: {}]
  %s2 = inlined_call_operand.hbm [shape: f32[16,384], index: 2, kind: input, shape index: {}]
  %s3 = inlined_call_operand.hbm [shape: f32[128,256], index: 3, kind: input, shape index: {}]
  %s4 = inlined_call_operand.hbm [shape: f32[128,128], index: 4, kind: input, shape index: {}]
  %s5 = inlined_call_operand.vmem [shape: f32[1,384], index: 5, kind: input, shape index: {}]
  %s6 = inlined_call_operand.vmem [shape: f32[1,128], index: 6, kind: input, shape index: {}]
  %s7 = inlined_call_operand.hbm [shape: f32[8,128], index: 7, kind: output, shape index: {}]
  %s8 = sld [smem:[#allocation0]]
  $region58: #{tpu_custom_call.1} parent=0
    _
  %s10 = ssub.s32 1, %s8
  %s11 = scalar_select 0, %s10, %s8
  $region1: #{tpu_custom_call.1} parent=0
    #allocation2 [shape = 'u8[4096]{0}', space=vmem, size = 0x1000, scoped, tag = 'input window, operand 0, single buffered']
    #allocation3 [shape = 's32[1]{0}', space=sflag, size = 0x4, scoped, tag = 'scoped memory for tpu_custom_call.1']
    #allocation4 [shape = 's32[1]{0}', space=sflag, size = 0x4, scoped, tag = 'scoped memory for tpu_custom_call.1']
    #allocation5 [shape = 'u8[4096]{0}', space=vmem, size = 0x1000, scoped, tag = 'input window, operand 1, single buffered']
    #allocation6 [shape = 's32[1]{0}', space=sflag, size = 0x4, scoped, tag = 'scoped memory for tpu_custom_call.1']
    #allocation7 [shape = 'u8[24576]{0}', space=vmem, size = 0x6000, scoped, tag = 'input window, operand 2, single buffered']
    #allocation8 [shape = 'u8[131072]{0}', space=vmem, size = 0x20000, scoped, tag = 'input window, operand 3, single buffered']
    #allocation9 [shape = 's32[1]{0}', space=sflag, size = 0x4, scoped, tag = 'scoped memory for tpu_custom_call.1']
    #allocation10 [shape = 'u8[65536]{0}', space=vmem, size = 0x10000, scoped, tag = 'input window, operand 4, single buffered']
    #allocation11 [shape = 'u8[4096]{0}', space=vmem, size = 0x1000, scoped, tag = 'output window, operand 0, single buffered']
    %12 = vsyncpa [#allocation3], 0
    %13 = vsyncpa [#allocation6], 0
    %14 = vsyncpa [#allocation9], 0
    %15 = vsyncpa [#allocation4], 0
    // Predicated region
    $region2: #{tpu_custom_call.1} parent=1 // pred_check
      _
    $region3: #{tpu_custom_call.1} parent=1 // pred_check_branch
      %17 = sbr.rel (0) target = $region5
    $region4: #{tpu_custom_call.1} parent=1 // pred_region
      %s19 = ssub.s32 128, 128
      %20 = vsyncadd [#allocation3], %s19
      %s22 = sshll.u32 [#allocation2], 4
      %s23 = int_to_ptr.vmem [resolvable:$true] %s22
      %25 = dma.hbm_to_vmem [thread:$0]  %s0, 128, %s23, [#allocation3]
    $region5: #{tpu_custom_call.1} parent=1 // pred_fallthru
      _
    // Predicated region
    $region6: #{tpu_custom_call.1} parent=1 // pred_check
      _
    $region7: #{tpu_custom_call.1} parent=1 // pred_check_branch
      %27 = sbr.rel (0) target = $region9
    $region8: #{tpu_custom_call.1} parent=1 // pred_region
      %s29 = ssub.s32 128, 128
      %30 = vsyncadd [#allocation6], %s29
      %s32 = sshll.u32 [#allocation5], 4
      %s33 = int_to_ptr.vmem [resolvable:$true] %s32
      %35 = dma.hbm_to_vmem [thread:$0]  %s1, 128, %s33, [#allocation6]
    $region9: #{tpu_custom_call.1} parent=1 // pred_fallthru
      _
    // Predicated region
    $region10: #{tpu_custom_call.1} parent=1 // pred_check
      _
    $region11: #{tpu_custom_call.1} parent=1 // pred_check_branch
      %37 = sbr.rel (0) target = $region13
    $region12: #{tpu_custom_call.1} parent=1 // pred_region
      %s39 = ssub.s32 768, 768
      %40 = vsyncadd [#allocation6], %s39
      %s41 = sshll.u32 [#allocation7], 4
      %s42 = int_to_ptr.vmem [resolvable:$true] %s41
      %47 = dma.hbm_to_vmem [thread:$0]  %s2, 768, %s42, [#allocation6], 384, 384, 24
    $region13: #{tpu_custom_call.1} parent=1 // pred_fallthru
      _
    // Predicated region
    $region14: #{tpu_custom_call.1} parent=1 // pred_check
      _
    $region15: #{tpu_custom_call.1} parent=1 // pred_check_branch
      %49 = sbr.rel (0) target = $region17
    $region16: #{tpu_custom_call.1} parent=1 // pred_region
      %s51 = ssub.s32 4096, 4096
      %52 = vsyncadd [#allocation9], %s51
      %s53 = sshll.u32 [#allocation8], 4
      %s54 = int_to_ptr.vmem [resolvable:$true] %s53
      %59 = dma.hbm_to_vmem [thread:$0]  %s3, 4096, %s54, [#allocation9], 256, 256, 16
    $region17: #{tpu_custom_call.1} parent=1 // pred_fallthru
      _
    // Predicated region
    $region18: #{tpu_custom_call.1} parent=1 // pred_check
      _
    $region19: #{tpu_custom_call.1} parent=1 // pred_check_branch
      %61 = sbr.rel (0) target = $region21
    $region20: #{tpu_custom_call.1} parent=1 // pred_region
      %s63 = ssub.s32 2048, 2048
      %64 = vsyncadd [#allocation9], %s63
      %s65 = sshll.u32 [#allocation10], 4
      %s66 = int_to_ptr.vmem [resolvable:$true] %s65
      %71 = dma.hbm_to_vmem [thread:$0]  %s4, 2048, %s66, [#allocation9], 128, 128, 8
    $region21: #{tpu_custom_call.1} parent=1 // pred_fallthru
      _
    // Predicated region
    $region22: #{tpu_custom_call.1} parent=1 // pred_check
      _
    $region23: #{tpu_custom_call.1} parent=1 // pred_check_branch
      %73 = sbr.rel (0) target = $region25
    $region24: #{tpu_custom_call.1} parent=1 // pred_region
      _
    $region25: #{tpu_custom_call.1} parent=1 // pred_fallthru
      _
    // Predicated region
    $region26: #{tpu_custom_call.1} parent=1 // pred_check
      _
    $region27: #{tpu_custom_call.1} parent=1 // pred_check_branch
      %75 = sbr.rel (0) target = $region29
    $region28: #{tpu_custom_call.1} parent=1 // pred_region
      _
    $region29: #{tpu_custom_call.1} parent=1 // pred_fallthru
      _
    // Predicated region
    $region30: #{tpu_custom_call.1} parent=1 // pred_check
      _
    $region31: #{tpu_custom_call.1} parent=1 // pred_check_branch
      %77 = sbr.rel (0) target = $region33
    $region32: #{tpu_custom_call.1} parent=1 // pred_region
      %78 = dma.done [#allocation3], 128
    $region33: #{tpu_custom_call.1} parent=1 // pred_fallthru
      _
    // Predicated region
    $region34: #{tpu_custom_call.1} parent=1 // pred_check
      _
    $region35: #{tpu_custom_call.1} parent=1 // pred_check_branch
      %80 = sbr.rel (0) target = $region37
    $region36: #{tpu_custom_call.1} parent=1 // pred_region
      %81 = dma.done [#allocation6], 128
    $region37: #{tpu_custom_call.1} parent=1 // pred_fallthru
      _
    // Predicated region
    $region38: #{tpu_custom_call.1} parent=1 // pred_check
      _
    $region39: #{tpu_custom_call.1} parent=1 // pred_check_branch
      %83 = sbr.rel (0) target = $region41
    $region40: #{tpu_custom_call.1} parent=1 // pred_region
      %84 = dma.done [#allocation6], 768
    $region41: #{tpu_custom_call.1} parent=1 // pred_fallthru
      _
    // Predicated region
    $region42: #{tpu_custom_call.1} parent=1 // pred_check
      _
    $region43: #{tpu_custom_call.1} parent=1 // pred_check_branch
      %86 = sbr.rel (0) target = $region45
    $region44: #{tpu_custom_call.1} parent=1 // pred_region
      %87 = dma.done [#allocation9], 4096
    $region45: #{tpu_custom_call.1} parent=1 // pred_fallthru
      _
    // Predicated region
    $region46: #{tpu_custom_call.1} parent=1 // pred_check
      _
    $region47: #{tpu_custom_call.1} parent=1 // pred_check_branch
      %89 = sbr.rel (0) target = $region49
    $region48: #{tpu_custom_call.1} parent=1 // pred_region
      %90 = dma.done [#allocation9], 2048
    $region49: #{tpu_custom_call.1} parent=1 // pred_fallthru
      _
    %v91 = vld [vmem:[#allocation2] sm:$0xff]
    %v92 = vld [vmem:[#allocation5] sm:$0xff]
    %v93 = vld [vmem:[#allocation7] sm:$0xff]
    %v94 = vld [vmem:[#allocation7 + $0x8] sm:$0xff]
    %v95 = vld [vmem:[#allocation7 + $0x10] sm:$0xff]
    %v96 = vld [vmem:[#allocation7 + $0x18] sm:$0xff]
    %v97 = vld [vmem:[#allocation7 + $0x20] sm:$0xff]
    %v98 = vld [vmem:[#allocation7 + $0x28] sm:$0xff]
    %v99 = vld [vmem:[%s5] sm:$0x7]
    %v101 = vlaneseq
    %v102 = vshrl.u32 %v101, 7
    %v103 = vsub.s32 0, %v102
    %v104 = vrot.slane %v99, %v103
    %v105 = vlaneseq
    %v106 = vshrl.u32 %v105, 7
    %v107 = vsub.s32 1, %v106
    %v108 = vrot.slane %v99, %v107
    %v109 = vlaneseq
    %v110 = vshrl.u32 %v109, 7
    %v111 = vsub.s32 2, %v110
    %v112 = vrot.slane %v99, %v111
    %vm116 = vcmask 130048
    %v118 = vsel %vm116, %v91, 0
    %120 = vmatprep.subr.mxu0 %v94
    %121 = vmatpush1.msra.mxu0 %v93
    %122 = vmatprep.subr.mxu0 %v97
    %123 = vmatpush1.msra.mxu0 %v96
    %124 = vmatprep.subr.mxu0 0.0
    %125 = vmatpush1.msra.mxu0 0.0
    %126 = vmatprep.subr.mxu0 0.0
    %127 = vmatpush1.msra.mxu0 0.0
    %128 = vmatprep.subr.mxu0 0.0
    %129 = vmatpush1.msra.mxu0 0.0
    %130 = vmatprep.subr.mxu0 0.0
    %131 = vmatpush1.msra.mxu0 0.0
    %132 = vmatprep.subr.mxu0 0.0
    %133 = vmatpush1.msra.mxu0 0.0
    %134 = vmatprep.subr.mxu0 0.0
    %135 = vmatpush1.msra.mxu0 0.0
    %136 = vmatprep.subr.mxu0 0.0
    %137 = vmatpush1.msra.mxu0 0.0
    %138 = vmatprep.subr.mxu0 0.0
    %139 = vmatpush1.msra.mxu0 0.0
    %140 = vmatprep.subr.mxu0 0.0
    %141 = vmatpush1.msra.mxu0 0.0
    %142 = vmatprep.subr.mxu0 0.0
    %143 = vmatpush1.msra.mxu0 0.0
    %144 = vmatprep.subr.mxu0 0.0
    %145 = vmatpush1.msra.mxu0 0.0
    %146 = vmatprep.subr.mxu0 0.0
    %147 = vmatpush1.msra.mxu0 0.0
    %148 = vmatprep.subr.mxu0 0.0
    %149 = vmatpush1.msra.mxu0 0.0
    %150 = vmatprep.subr.mxu0 0.0
    %151 = vmatpush1.msra.mxu0 0.0
    %152 = vmatprep.subr.mxu0 0.0
    %153 = vmatpush1.msra.mxu0 0.0
    %154 = vmatprep.subr.mxu0 0.0
    %155 = vmatpush1.msra.mxu0 0.0
    %156 = vmatprep.subr.mxu0 0.0
    %157 = vmatpush1.msra.mxu0 0.0
    %158 = vmatprep.subr.mxu0 0.0
    %159 = vmatpush1.msra.mxu0 0.0
    %160 = vmatprep.subr.mxu0 0.0
    %161 = vmatpush1.msra.mxu0 0.0
    %162 = vmatprep.subr.mxu0 0.0
    %163 = vmatpush1.msra.mxu0 0.0
    %164 = vmatprep.subr.mxu0 0.0
    %165 = vmatpush1.msra.mxu0 0.0
    %166 = vmatprep.subr.mxu0 0.0
    %167 = vmatpush1.msra.mxu0 0.0
    %168 = vmatprep.subr.mxu0 0.0
    %169 = vmatpush1.msra.mxu0 0.0
    %170 = vmatprep.subr.mxu0 0.0
    %171 = vmatpush1.msra.mxu0 0.0
    %172 = vmatprep.subr.mxu0 0.0
    %173 = vmatpush1.msra.mxu0 0.0
    %174 = vmatprep.subr.mxu0 0.0
    %175 = vmatpush1.msra.mxu0 0.0
    %176 = vmatprep.subr.mxu0 0.0
    %177 = vmatpush1.msra.mxu0 0.0
    %178 = vmatprep.subr.mxu0 0.0
    %179 = vmatpush1.msra.mxu0 0.0
    %180 = vmatprep.subr.mxu0 0.0
    %181 = vmatpush1.msra.mxu0 0.0
    %182 = vmatprep.subr.mxu0 0.0
    %183 = vmatpush1.msra.mxu0 0.0
    %184 = vmatprep.mubr.f32.mxu0 0.0
    %185 = vmatmul.mubr.f32.gmra.mrb[0].mxu0 %v118
    %v186 = vpop.f32.mrb[0].mxu0
    %v187 = vadd.f32 %v104, %v186
    %v188 = vpop.f32.mrb[0].mxu0
    %v189 = vadd.f32 %v108, %v188
    %190 = vdwg.mxu0
    %191 = vmatprep.subr.mxu0 0.0
    %192 = vmatpush1.msra.mxu0 %v95
    %193 = vmatprep.subr.mxu0 0.0
    %194 = vmatpush1.msra.mxu0 %v98
    %195 = vmatprep.subr.mxu0 0.0
    %196 = vmatpush1.msra.mxu0 0.0
    %197 = vmatprep.subr.mxu0 0.0
    %198 = vmatpush1.msra.mxu0 0.0
    %199 = vmatprep.subr.mxu0 0.0
    %200 = vmatpush1.msra.mxu0 0.0
    %201 = vmatprep.subr.mxu0 0.0
    %202 = vmatpush1.msra.mxu0 0.0
    %203 = vmatprep.subr.mxu0 0.0
    %204 = vmatpush1.msra.mxu0 0.0
    %205 = vmatprep.subr.mxu0 0.0
    %206 = vmatpush1.msra.mxu0 0.0
    %207 = vmatprep.subr.mxu0 0.0
    %208 = vmatpush1.msra.mxu0 0.0
    %209 = vmatprep.subr.mxu0 0.0
    %210 = vmatpush1.msra.mxu0 0.0
    %211 = vmatprep.subr.mxu0 0.0
    %212 = vmatpush1.msra.mxu0 0.0
    %213 = vmatprep.subr.mxu0 0.0
    %214 = vmatpush1.msra.mxu0 0.0
    %215 = vmatprep.subr.mxu0 0.0
    %216 = vmatpush1.msra.mxu0 0.0
    %217 = vmatprep.subr.mxu0 0.0
    %218 = vmatpush1.msra.mxu0 0.0
    %219 = vmatprep.subr.mxu0 0.0
    %220 = vmatpush1.msra.mxu0 0.0
    %221 = vmatprep.subr.mxu0 0.0
    %222 = vmatpush1.msra.mxu0 0.0
    %223 = vmatprep.subr.mxu0 0.0
    %224 = vmatpush1.msra.mxu0 0.0
    %225 = vmatprep.subr.mxu0 0.0
    %226 = vmatpush1.msra.mxu0 0.0
    %227 = vmatprep.subr.mxu0 0.0
    %228 = vmatpush1.msra.mxu0 0.0
    %229 = vmatprep.subr.mxu0 0.0
    %230 = vmatpush1.msra.mxu0 0.0
    %231 = vmatprep.subr.mxu0 0.0
    %232 = vmatpush1.msra.mxu0 0.0
    %233 = vmatprep.subr.mxu0 0.0
    %234 = vmatpush1.msra.mxu0 0.0
    %235 = vmatprep.subr.mxu0 0.0
    %236 = vmatpush1.msra.mxu0 0.0
    %237 = vmatprep.subr.mxu0 0.0
    %238 = vmatpush1.msra.mxu0 0.0
    %239 = vmatprep.subr.mxu0 0.0
    %240 = vmatpush1.msra.mxu0 0.0
    %241 = vmatprep.subr.mxu0 0.0
    %242 = vmatpush1.msra.mxu0 0.0
    %243 = vmatprep.subr.mxu0 0.0
    %244 = vmatpush1.msra.mxu0 0.0
    %245 = vmatprep.subr.mxu0 0.0
    %246 = vmatpush1.msra.mxu0 0.0
    %247 = vmatprep.subr.mxu0 0.0
    %248 = vmatpush1.msra.mxu0 0.0
    %249 = vmatprep.subr.mxu0 0.0
    %250 = vmatpush1.msra.mxu0 0.0
    %251 = vmatprep.subr.mxu0 0.0
    %252 = vmatpush1.msra.mxu0 0.0
    %253 = vmatprep.subr.mxu0 0.0
    %254 = vmatpush1.msra.mxu0 0.0
    %255 = vmatprep.mubr.f32.mxu0 0.0
    %256 = vmatmul.mubr.f32.gmra.mrb[0].mxu0 %v118
    %v257 = vpop.f32.mrb[0].mxu0
    %v258 = vadd.f32 %v112, %v257
    %v259 = vpop.f32.mrb[0].mxu0
    %260 = vdwg.mxu0
    %v261 = vld [vmem:[#allocation8] sm:$0xff]
    %v262 = vld [vmem:[#allocation8 + $0x8] sm:$0xff]
    %v263 = vld [vmem:[#allocation8 + $0x10] sm:$0xff]
    %v264 = vld [vmem:[#allocation8 + $0x18] sm:$0xff]
    %v265 = vld [vmem:[#allocation8 + $0x20] sm:$0xff]
    %v266 = vld [vmem:[#allocation8 + $0x28] sm:$0xff]
    %v267 = vld [vmem:[#allocation8 + $0x30] sm:$0xff]
    %v268 = vld [vmem:[#allocation8 + $0x38] sm:$0xff]
    %v269 = vld [vmem:[#allocation8 + $0x40] sm:$0xff]
    %v270 = vld [vmem:[#allocation8 + $0x48] sm:$0xff]
    %v271 = vld [vmem:[#allocation8 + $0x50] sm:$0xff]
    %v272 = vld [vmem:[#allocation8 + $0x58] sm:$0xff]
    %v273 = vld [vmem:[#allocation8 + $0x60] sm:$0xff]
    %v274 = vld [vmem:[#allocation8 + $0x68] sm:$0xff]
    %v275 = vld [vmem:[#allocation8 + $0x70] sm:$0xff]
    %v276 = vld [vmem:[#allocation8 + $0x78] sm:$0xff]
    %v277 = vld [vmem:[#allocation8 + $0x80] sm:$0xff]
    %v278 = vld [vmem:[#allocation8 + $0x88] sm:$0xff]
    %v279 = vld [vmem:[#allocation8 + $0x90] sm:$0xff]
    %v280 = vld [vmem:[#allocation8 + $0x98] sm:$0xff]
    %v281 = vld [vmem:[#allocation8 + $0xa0] sm:$0xff]
    %v282 = vld [vmem:[#allocation8 + $0xa8] sm:$0xff]
    %v283 = vld [vmem:[#allocation8 + $0xb0] sm:$0xff]
    %v284 = vld [vmem:[#allocation8 + $0xb8] sm:$0xff]
    %v285 = vld [vmem:[#allocation8 + $0xc0] sm:$0xff]
    %v286 = vld [vmem:[#allocation8 + $0xc8] sm:$0xff]
    %v287 = vld [vmem:[#allocation8 + $0xd0] sm:$0xff]
    %v288 = vld [vmem:[#allocation8 + $0xd8] sm:$0xff]
    %v289 = vld [vmem:[#allocation8 + $0xe0] sm:$0xff]
    %v290 = vld [vmem:[#allocation8 + $0xe8] sm:$0xff]
    %v291 = vld [vmem:[#allocation8 + $0xf0] sm:$0xff]
    %v292 = vld [vmem:[#allocation8 + $0xf8] sm:$0xff]
    %293 = vmatprep.subr.mxu0 %v262
    %294 = vmatpush1.msra.mxu0 %v261
    %295 = vmatprep.subr.mxu0 %v264
    %296 = vmatpush1.msra.mxu0 %v263
    %297 = vmatprep.subr.mxu0 %v266
    %298 = vmatpush1.msra.mxu0 %v265
    %299 = vmatprep.subr.mxu0 %v268
    %300 = vmatpush1.msra.mxu0 %v267
    %301 = vmatprep.subr.mxu0 %v270
    %302 = vmatpush1.msra.mxu0 %v269
    %303 = vmatprep.subr.mxu0 %v272
    %304 = vmatpush1.msra.mxu0 %v271
    %305 = vmatprep.subr.mxu0 %v274
    %306 = vmatpush1.msra.mxu0 %v273
    %307 = vmatprep.subr.mxu0 %v276
    %308 = vmatpush1.msra.mxu0 %v275
    %309 = vmatprep.subr.mxu0 %v278
    %310 = vmatpush1.msra.mxu0 %v277
    %311 = vmatprep.subr.mxu0 %v280
    %312 = vmatpush1.msra.mxu0 %v279
    %313 = vmatprep.subr.mxu0 %v282
    %314 = vmatpush1.msra.mxu0 %v281
    %315 = vmatprep.subr.mxu0 %v284
    %316 = vmatpush1.msra.mxu0 %v283
    %317 = vmatprep.subr.mxu0 %v286
    %318 = vmatpush1.msra.mxu0 %v285
    %319 = vmatprep.subr.mxu0 %v288
    %320 = vmatpush1.msra.mxu0 %v287
    %321 = vmatprep.subr.mxu0 %v290
    %322 = vmatpush1.msra.mxu0 %v289
    %323 = vmatprep.subr.mxu0 %v292
    %324 = vmatpush1.msra.mxu0 %v291
    %325 = vmatprep.subr.mxu0 0.0
    %326 = vmatpush1.msra.mxu0 0.0
    %327 = vmatprep.subr.mxu0 0.0
    %328 = vmatpush1.msra.mxu0 0.0
    %329 = vmatprep.subr.mxu0 0.0
    %330 = vmatpush1.msra.mxu0 0.0
    %331 = vmatprep.subr.mxu0 0.0
    %332 = vmatpush1.msra.mxu0 0.0
    %333 = vmatprep.subr.mxu0 0.0
    %334 = vmatpush1.msra.mxu0 0.0
    %335 = vmatprep.subr.mxu0 0.0
    %336 = vmatpush1.msra.mxu0 0.0
    %337 = vmatprep.subr.mxu0 0.0
    %338 = vmatpush1.msra.mxu0 0.0
    %339 = vmatprep.subr.mxu0 0.0
    %340 = vmatpush1.msra.mxu0 0.0
    %341 = vmatprep.subr.mxu0 0.0
    %342 = vmatpush1.msra.mxu0 0.0
    %343 = vmatprep.subr.mxu0 0.0
    %344 = vmatpush1.msra.mxu0 0.0
    %345 = vmatprep.subr.mxu0 0.0
    %346 = vmatpush1.msra.mxu0 0.0
    %347 = vmatprep.subr.mxu0 0.0
    %348 = vmatpush1.msra.mxu0 0.0
    %349 = vmatprep.subr.mxu0 0.0
    %350 = vmatpush1.msra.mxu0 0.0
    %351 = vmatprep.subr.mxu0 0.0
    %352 = vmatpush1.msra.mxu0 0.0
    %353 = vmatprep.subr.mxu0 0.0
    %354 = vmatpush1.msra.mxu0 0.0
    %355 = vmatprep.subr.mxu0 0.0
    %356 = vmatpush1.msra.mxu0 0.0
    %357 = vmatprep.mubr.f32.mxu0 0.0
    %358 = vmatmul.mubr.f32.gmra.mrb[0].mxu0 %v92
    %v359 = vpop.f32.mrb[0].mxu0
    %v360 = vadd.f32 0.0, %v359
    %v361 = vpop.f32.mrb[0].mxu0
    %v362 = vadd.f32 0.0, %v361
    %363 = vdwg.mxu0
    %v364 = vadd.f32 %v187, %v360
    %v365 = vxor.u32 %v364, 2147483648
    %v366 = vmul.f32 %v365, 1.442695
    %v367 = vpow.pop %v366
    %v368 = vadd.f32 %v367, 1.0
    %v369 = vrcp.pop %v368
    %v370 = vmul.f32 1.0, %v369
    %v371 = vadd.f32 %v189, %v362
    %v372 = vtanh.pop %v371
    %v373 = vld [vmem:[%s6] sm:$0x1]
    %v375 = vlaneseq
    %v376 = vshrl.u32 %v375, 7
    %v377 = vsub.s32 0, %v376
    %v378 = vrot.slane %v373, %v377
    %v380 = vmul.f32 %v372, %v378
    %381 = vmax.xlane.f32.xlu0 %v380
    %v382 = vpop.xlane.xlu0 %381
    %v383 = vsub.f32 %v380, %v382
    %v384 = vmul.f32 %v383, 1.442695
    %v385 = vpow.pop %v384
    %386 = vadd.xlane.f32.xlu0 %v385
    %v387 = vpop.xlane.xlu0 %386
    %v388 = vrcp.pop %v387
    %v389 = vmul.f32 %v385, %v388
    %v390 = vmul.f32 %v389, %v92
    %v391 = vld [vmem:[#allocation10] sm:$0xff]
    %v392 = vld [vmem:[#allocation10 + $0x8] sm:$0xff]
    %v393 = vld [vmem:[#allocation10 + $0x10] sm:$0xff]
    %v394 = vld [vmem:[#allocation10 + $0x18] sm:$0xff]
    %v395 = vld [vmem:[#allocation10 + $0x20] sm:$0xff]
    %v396 = vld [vmem:[#allocation10 + $0x28] sm:$0xff]
    %v397 = vld [vmem:[#allocation10 + $0x30] sm:$0xff]
    %v398 = vld [vmem:[#allocation10 + $0x38] sm:$0xff]
    %v399 = vld [vmem:[#allocation10 + $0x40] sm:$0xff]
    %v400 = vld [vmem:[#allocation10 + $0x48] sm:$0xff]
    %v401 = vld [vmem:[#allocation10 + $0x50] sm:$0xff]
    %v402 = vld [vmem:[#allocation10 + $0x58] sm:$0xff]
    %v403 = vld [vmem:[#allocation10 + $0x60] sm:$0xff]
    %v404 = vld [vmem:[#allocation10 + $0x68] sm:$0xff]
    %v405 = vld [vmem:[#allocation10 + $0x70] sm:$0xff]
    %v406 = vld [vmem:[#allocation10 + $0x78] sm:$0xff]
    %407 = vmatprep.subr.mxu0 0.0
    %408 = vmatpush1.msra.mxu0 %v391
    %409 = vmatprep.subr.mxu0 0.0
    %410 = vmatpush1.msra.mxu0 %v392
    %411 = vmatprep.subr.mxu0 0.0
    %412 = vmatpush1.msra.mxu0 %v393
    %413 = vmatprep.subr.mxu0 0.0
    %414 = vmatpush1.msra.mxu0 %v394
    %415 = vmatprep.subr.mxu0 0.0
    %416 = vmatpush1.msra.mxu0 %v395
    %417 = vmatprep.subr.mxu0 0.0
    %418 = vmatpush1.msra.mxu0 %v396
    %419 = vmatprep.subr.mxu0 0.0
    %420 = vmatpush1.msra.mxu0 %v397
    %421 = vmatprep.subr.mxu0 0.0
    %422 = vmatpush1.msra.mxu0 %v398
    %423 = vmatprep.subr.mxu0 0.0
    %424 = vmatpush1.msra.mxu0 %v399
    %425 = vmatprep.subr.mxu0 0.0
    %426 = vmatpush1.msra.mxu0 %v400
    %427 = vmatprep.subr.mxu0 0.0
    %428 = vmatpush1.msra.mxu0 %v401
    %429 = vmatprep.subr.mxu0 0.0
    %430 = vmatpush1.msra.mxu0 %v402
    %431 = vmatprep.subr.mxu0 0.0
    %432 = vmatpush1.msra.mxu0 %v403
    %433 = vmatprep.subr.mxu0 0.0
    %434 = vmatpush1.msra.mxu0 %v404
    %435 = vmatprep.subr.mxu0 0.0
    %436 = vmatpush1.msra.mxu0 %v405
    %437 = vmatprep.subr.mxu0 0.0
    %438 = vmatpush1.msra.mxu0 %v406
    %439 = vmatprep.subr.mxu0 0.0
    %440 = vmatpush1.msra.mxu0 0.0
    %441 = vmatprep.subr.mxu0 0.0
    %442 = vmatpush1.msra.mxu0 0.0
    %443 = vmatprep.subr.mxu0 0.0
    %444 = vmatpush1.msra.mxu0 0.0
    %445 = vmatprep.subr.mxu0 0.0
    %446 = vmatpush1.msra.mxu0 0.0
    %447 = vmatprep.subr.mxu0 0.0
    %448 = vmatpush1.msra.mxu0 0.0
    %449 = vmatprep.subr.mxu0 0.0
    %450 = vmatpush1.msra.mxu0 0.0
    %451 = vmatprep.subr.mxu0 0.0
    %452 = vmatpush1.msra.mxu0 0.0
    %453 = vmatprep.subr.mxu0 0.0
    %454 = vmatpush1.msra.mxu0 0.0
    %455 = vmatprep.subr.mxu0 0.0
    %456 = vmatpush1.msra.mxu0 0.0
    %457 = vmatprep.subr.mxu0 0.0
    %458 = vmatpush1.msra.mxu0 0.0
    %459 = vmatprep.subr.mxu0 0.0
    %460 = vmatpush1.msra.mxu0 0.0
    %461 = vmatprep.subr.mxu0 0.0
    %462 = vmatpush1.msra.mxu0 0.0
    %463 = vmatprep.subr.mxu0 0.0
    %464 = vmatpush1.msra.mxu0 0.0
    %465 = vmatprep.subr.mxu0 0.0
    %466 = vmatpush1.msra.mxu0 0.0
    %467 = vmatprep.subr.mxu0 0.0
    %468 = vmatpush1.msra.mxu0 0.0
    %469 = vmatprep.subr.mxu0 0.0
    %470 = vmatpush1.msra.mxu0 0.0
    %471 = vmatprep.mubr.f32.mxu0 0.0
    %472 = vmatmul.mubr.f32.gmra.mrb[0].mxu0 %v390
    %v473 = vpop.f32.mrb[0].mxu0
    %v474 = vadd.f32 0.0, %v473
    %v475 = vpop.f32.mrb[0].mxu0
    %476 = vdwg.mxu0
    %v477 = vadd.f32 %v258, %v474
    %v478 = vtanh.pop %v477
    %v479 = vsub.f32 1.0, %v370
    %v480 = vmul.f32 %v479, %v92
    %v481 = vmul.f32 %v370, %v478
    %v482 = vadd.f32 %v480, %v481
    %483 = vst [vmem:[#allocation11] sm:$0xff] %v482
    // Predicated region
    $region50: #{tpu_custom_call.1} parent=1 // pred_check
      _
    $region51: #{tpu_custom_call.1} parent=1 // pred_check_branch
      %485 = sbr.rel (0) target = $region53
    $region52: #{tpu_custom_call.1} parent=1 // pred_region
      %s487 = ssub.s32 128, 128
      %488 = vsyncadd [#allocation4], %s487
      %s490 = sshll.u32 [#allocation11], 4
      %s491 = int_to_ptr.vmem [resolvable:$true] %s490
      %493 = dma.vmem_to_hbm [thread:$0]  %s491, 128, %s7, [#allocation4]
    $region53: #{tpu_custom_call.1} parent=1 // pred_fallthru
      _
    // Predicated region
    $region54: #{tpu_custom_call.1} parent=1 // pred_check
      _
    $region55: #{tpu_custom_call.1} parent=1 // pred_check_branch
      %495 = sbr.rel (0) target = $region57
    $region56: #{tpu_custom_call.1} parent=1 // pred_region
      %496 = dma.done [#allocation4], 128
    $region57: #{tpu_custom_call.1} parent=1 // pred_fallthru
      _
    %497 = vsyncpa [#allocation3], 1
    %498 = vsyncpa [#allocation6], 1
    %499 = vsyncpa [#allocation9], 1
    %500 = vsyncpa [#allocation4], 1

</llo_original>
